<compile_context>
chip_gen: v6e
topology: v6e:2x2x1
jax: 0.10.0
libtpu: 0.0.40
codegen_flags: <defaults>
</compile_context>

<pallas_src>
import jax
import jax.numpy as jnp
from jax.experimental import pallas as pl
from jax.experimental.pallas import tpu as pltpu


# ---------------------------------------------------------------------------
# DummyPatchDropLayer
# ---------------------------------------------------------------------------
def dummy_patch_drop(patches: jnp.ndarray):
    """Equivalent of DummyPatchDropLayer.forward: pure pass-through, kernel elided."""
    return patches, None, None


_LANES = 128
_TARGET_BLOCK_BYTES = 2 << 20  # 2 MiB/block: 4x double-buffered = 8 MiB, safe on all gens


def _copy_kernel(x_ref, o_ref):
    o_ref[...] = x_ref[...]


def materialize_patches(patches: jnp.ndarray) -> jnp.ndarray:
    """Identity copy of `patches` into a *fresh* buffer (no aliasing) via a
    lane-dense, row-tiled Pallas kernel."""
    orig_shape = patches.shape
    size = patches.size
    itemsize = jnp.dtype(patches.dtype).itemsize

    if size % _LANES == 0:
        rows, lanes = size // _LANES, _LANES          # fully lane-dense [rows, 128]
    else:
        # Fold everything but the leading dim into lanes: one masked tail
        # store per row-block instead of per native (narrow) row.
        rows = orig_shape[0] if len(orig_shape) > 1 else 1
        lanes = size // rows
    x2d = patches.reshape(rows, lanes)

    block_rows = max(1, _TARGET_BLOCK_BYTES // (lanes * itemsize))
    if block_rows < rows:
        block_rows = max(8, (block_rows // 8) * 8)    # multiple of 8 (sublane)
    else:
        block_rows = rows                              # full dim -> always legal
    grid = (pl.cdiv(rows, block_rows),)

    out2d = pl.pallas_call(
        _copy_kernel,
        out_shape=jax.ShapeDtypeStruct((rows, lanes), patches.dtype),
        grid=grid,
        in_specs=[pl.BlockSpec((block_rows, lanes), lambda i: (i, 0))],
        out_specs=pl.BlockSpec((block_rows, lanes), lambda i: (i, 0)),
        compiler_params=pltpu.CompilerParams(
            dimension_semantics=("parallel",),
        ),
    )(x2d)
    return out2d.reshape(orig_shape)


# ---------------------------------------------------------------------------
# PatchClassifier head: mean-pool over patch tokens (CLS dropped) + Linear(D, 1)
# ---------------------------------------------------------------------------
def _make_head_kernel(total_tokens: int, token_chunk: int, needs_mask: bool):
    inv_den = 1.0 / float(total_tokens - 1)  # mean over the T-1 patch tokens

    def kernel(tokens_ref, w_ref, b_ref, o_ref, acc_ref):
        ti = pl.program_id(1)

        @pl.when(ti == 0)
        def _init():
            acc_ref[...] = jnp.zeros_like(acc_ref)

        chunk = tokens_ref[...].astype(jnp.float32)          # (TB, TT, D), f32 accumulate

        if needs_mask:
            # Zero the DMA-padded tail rows of the last token chunk.
            tok_idx = ti * token_chunk + jax.lax.broadcasted_iota(
                jnp.int32, chunk.shape, dimension=1)
            chunk = jnp.where(tok_idx < total_tokens, chunk, 0.0)

        # Aligned full-chunk sum over the token (sublane) axis.
        acc_ref[...] += jnp.sum(chunk, axis=1)               # (TB, D)

        # Token 0 is the CLS token (lives in chunk 0): subtract its row so the
        # pooled mean covers tokens[1:] without an unaligned +1 sublane slice.
        @pl.when(ti == 0)
        def _drop_cls():
            acc_ref[...] -= chunk[:, 0, :]

        @pl.when(ti == pl.num_programs(1) - 1)
        def _finalize():
            pooled = acc_ref[...] * inv_den                            # (TB, D)
            wv = w_ref[...].astype(jnp.float32)                        # (1, D)
            logits = jnp.sum(pooled * wv, axis=-1, keepdims=True)      # VPU mul + lane reduce
            o_ref[...] = (logits + b_ref[0, 0]).astype(o_ref.dtype)    # bias from SMEM

    return kernel


def patch_classifier_head(tokens: jnp.ndarray, w: jnp.ndarray, b: jnp.ndarray,
                          *, batch_tile: int | None = None,
                          token_chunk: int | None = None) -> jnp.ndarray:
    """logits = mean(tokens[:, 1:, :], axis=1) @ w.T + b  (torch Linear(D, 1) layout)."""
    B, T, D = tokens.shape
    w = w.reshape(1, D)
    b = jnp.asarray(b, dtype=jnp.float32).reshape(1, 1)

    # Batch tile: a multiple of 8 (output sublane constraint) unless it covers B.
    TB = min(B, 8) if batch_tile is None else min(batch_tile, B)
    if TB < B and TB % 8 != 0:
        TB = min(((TB + 7) // 8) * 8, B)
    B_pad = pl.cdiv(B, TB) * TB
    if B_pad != B:
        tokens = jnp.pad(tokens, ((0, B_pad - B), (0, 0), (0, 0)))

    # Token chunk: a multiple of 8 unless it covers the whole token axis.
    if token_chunk is None:
        token_chunk = 128
    if token_chunk >= T:
        TT = T
    else:
        TT = max(8, (token_chunk // 8) * 8)
    n_tok = pl.cdiv(T, TT)
    needs_mask = (T % TT) != 0

    # 2x double-buffered input tile + accumulator + small stuff, plus headroom.
    itemsize = jnp.dtype(tokens.dtype).itemsize
    in_tile_bytes = TB * TT * D * itemsize
    vmem_limit = max(
        int(2 * in_tile_bytes + TB * D * 4 + 4 * TB * 4 + 2 * D * 4 + (4 << 20)),
        16 << 20,
    )

    kernel = _make_head_kernel(T, TT, needs_mask)
    out = pl.pallas_call(
        kernel,
        out_shape=jax.ShapeDtypeStruct((B_pad, 1), jnp.float32),
        grid=(B_pad // TB, n_tok),
        in_specs=[
            pl.BlockSpec((TB, TT, D), lambda bi, ti: (bi, ti, 0)),
            pl.BlockSpec((1, D), lambda bi, ti: (0, 0)),
            pl.BlockSpec(memory_space=pltpu.MemorySpace.SMEM),   # bias scalar
        ],
        out_specs=pl.BlockSpec((TB, 1), lambda bi, ti: (bi, 0)),
        scratch_shapes=[pltpu.VMEM((TB, D), jnp.float32)],
        compiler_params=pltpu.CompilerParams(
            dimension_semantics=("parallel", "arbitrary"),
            vmem_limit_bytes=vmem_limit,
        ),
    )(tokens, w, b)
    return out[:B]


if __name__ == "__main__":
    import numpy as np  # host-side verification only

    key = jax.random.PRNGKey(0)
    k_patch, k_tok, k_w, k_b, k_tok2, k_w2 = jax.random.split(key, 6)

    # ---- DummyPatchDropLayer ----
    B, N, D = 2, 8, 32      # batch, num patch tokens, embed dim
    T = N + 1               # +1 CLS token

    patches = jax.random.normal(k_patch, (B, N, D), dtype=jnp.float32)
    patches_host = np.asarray(patches)

    out, mask, ids = dummy_patch_drop(patches)       # elided pass-through (zero-copy)
    assert mask is None and ids is None
    assert out.shape == patches.shape and out.dtype == patches.dtype
    assert np.array_equal(np.asarray(out), patches_host)

    out_copy = jax.block_until_ready(materialize_patches(patches))
    assert out_copy.shape == patches.shape and out_copy.dtype == patches.dtype
    np.testing.assert_array_equal(np.asarray(out_copy), patches_host)

    # ---- PatchClassifier head: small single-block path ----
    tokens = jax.random.normal(k_tok, (B, T, D), dtype=jnp.float32)
    w = jax.random.normal(k_w, (1, D), dtype=jnp.float32) * 0.02   # nn.Linear(D, 1).weight
    b = jax.random.normal(k_b, (1,), dtype=jnp.float32)            # nn.Linear(D, 1).bias

    logits = jax.block_until_ready(patch_classifier_head(tokens, w, b))
    tok_np = np.asarray(tokens)
    ref = tok_np[:, 1:, :].mean(axis=1) @ np.asarray(w).T + np.asarray(b).reshape(1, 1)
    assert logits.shape == (B, 1)
    np.testing.assert_allclose(np.asarray(logits), ref, rtol=1e-5, atol=1e-5)

    # ---- Head: tiled path (batch grid, token chunking + tail masking, bf16 in) ----
    B2, T2, D2 = 16, 21, 128
    tokens2 = jax.random.normal(k_tok2, (B2, T2, D2), dtype=jnp.float32).astype(jnp.bfloat16)
    w2 = jax.random.normal(k_w2, (1, D2), dtype=jnp.float32) * 0.02

    logits2 = jax.block_until_ready(
        patch_classifier_head(tokens2, w2, b, batch_tile=8, token_chunk=8))
    tok2_np = np.asarray(tokens2.astype(jnp.float32))
    ref2 = tok2_np[:, 1:, :].mean(axis=1) @ np.asarray(w2).T + np.asarray(b).reshape(1, 1)
    assert logits2.shape == (B2, 1)
    np.testing.assert_allclose(np.asarray(logits2), ref2, rtol=1e-4, atol=1e-4)

    print("KERNEL_OK")
</pallas_src>

<mosaic_0001>
module attributes {stable_mosaic.version = 11 : i64} {
  func.func @_copy_kernel(%arg0: i32, %arg1: memref<4x128xf32, #tpu.memory_space<vmem>>, %arg2: memref<4x128xf32, #tpu.memory_space<vmem>>) attributes {dimension_semantics = [#tpu.dimension_semantics<parallel>], iteration_bounds = array<i64: 1>, scalar_prefetch = 0 : i64, scratch_operands = 0 : i64, tpu.core_type = #tpu.core_type<tc>, window_params = [{transform_indices = @transform_0, window_bounds = array<i64: 4, 128>}, {transform_indices = @transform_1, window_bounds = array<i64: 4, 128>}]} {
    %c0 = arith.constant 0 : index
    %c0_0 = arith.constant 0 : index
    %0 = vector.load %arg1[%c0, %c0_0] : memref<4x128xf32, #tpu.memory_space<vmem>>, vector<4x128xf32>
    %c0_1 = arith.constant 0 : index
    %c0_2 = arith.constant 0 : index
    %1 = vector.load %arg2[%c0_1, %c0_2] : memref<4x128xf32, #tpu.memory_space<vmem>>, vector<4x128xf32>
    tpu.vector_store %arg2[%c0_1, %c0_2], %0 {strides = array<i32>} : memref<4x128xf32, #tpu.memory_space<vmem>>, vector<4x128xf32>,
    return
  }
  func.func @transform_0(%arg0: i32) -> (i32, i32) {
    %c0_i32 = arith.constant 0 : i32
    %c0_i32_0 = arith.constant 0 : i32
    return %arg0, %c0_i32 : i32, i32
  }
  func.func @transform_1(%arg0: i32) -> (i32, i32) {
    %c0_i32 = arith.constant 0 : i32
    %c0_i32_0 = arith.constant 0 : i32
    return %arg0, %c0_i32 : i32, i32
  }
}

</mosaic_0001>

<llo_original>
// kernel: tpu_custom_call.1
$region0: #{tpu_custom_call.1}
  #allocation0 [shape = 'u32[]', space=smem, size = 0x4, offset = 0x4, fixed_abs, tag = 'smem constant byte address 0x4 - core index']
  #allocation1 [shape = 'u32[144,128]{1,0:T(1,128)}', space=vmem, size = 0x12000, scoped, tag = 'internal scratch']
  %s0 = inlined_call_operand.hbm [shape: f32[4,128], index: 0, kind: input, shape index: {}]
  %s1 = inlined_call_operand.hbm [shape: f32[4,128], index: 1, kind: output, shape index: {}]
  %s2 = sld [smem:[#allocation0]]
  $region18: #{tpu_custom_call.1} parent=0
    _
  %s4 = ssub.s32 1, %s2
  %s5 = scalar_select 0, %s4, %s2
  $region1: #{tpu_custom_call.1} parent=0
    #allocation2 [shape = 'u8[2048]{0}', space=vmem, size = 0x800, scoped, tag = 'input window, operand 0, single buffered']
    #allocation3 [shape = 's32[1]{0}', space=sflag, size = 0x4, scoped, tag = 'scoped memory for tpu_custom_call.1']
    #allocation4 [shape = 's32[1]{0}', space=sflag, size = 0x4, scoped, tag = 'scoped memory for tpu_custom_call.1']
    #allocation5 [shape = 'u8[2048]{0}', space=vmem, size = 0x800, scoped, tag = 'output window, operand 0, single buffered']
    %6 = vsyncpa [#allocation3], 0
    %7 = vsyncpa [#allocation4], 0
    // Predicated region
    $region2: #{tpu_custom_call.1} parent=1 // pred_check
      _
    $region3: #{tpu_custom_call.1} parent=1 // pred_check_branch
      %9 = sbr.rel (0) target = $region5
    $region4: #{tpu_custom_call.1} parent=1 // pred_region
      %s11 = ssub.s32 64, 64
      %12 = vsyncadd [#allocation3], %s11
      %s14 = sshll.u32 [#allocation2], 4
      %s15 = int_to_ptr.vmem [resolvable:$true] %s14
      %17 = dma.hbm_to_vmem [thread:$0]  %s0, 64, %s15, [#allocation3]
    $region5: #{tpu_custom_call.1} parent=1 // pred_fallthru
      _
    // Predicated region
    $region6: #{tpu_custom_call.1} parent=1 // pred_check
      _
    $region7: #{tpu_custom_call.1} parent=1 // pred_check_branch
      %19 = sbr.rel (0) target = $region9
    $region8: #{tpu_custom_call.1} parent=1 // pred_region
      %20 = dma.done [#allocation3], 64
    $region9: #{tpu_custom_call.1} parent=1 // pred_fallthru
      _
    %v21 = vld [vmem:[#allocation2] sm:$0xf]
    %22 = vst [vmem:[#allocation5] sm:$0xf] %v21
    // Predicated region
    $region10: #{tpu_custom_call.1} parent=1 // pred_check
      _
    $region11: #{tpu_custom_call.1} parent=1 // pred_check_branch
      %24 = sbr.rel (0) target = $region13
    $region12: #{tpu_custom_call.1} parent=1 // pred_region
      %s26 = ssub.s32 64, 64
      %27 = vsyncadd [#allocation4], %s26
      %s29 = sshll.u32 [#allocation5], 4
      %s30 = int_to_ptr.vmem [resolvable:$true] %s29
      %32 = dma.vmem_to_hbm [thread:$0]  %s30, 64, %s1, [#allocation4]
    $region13: #{tpu_custom_call.1} parent=1 // pred_fallthru
      _
    // Predicated region
    $region14: #{tpu_custom_call.1} parent=1 // pred_check
      _
    $region15: #{tpu_custom_call.1} parent=1 // pred_check_branch
      %34 = sbr.rel (0) target = $region17
    $region16: #{tpu_custom_call.1} parent=1 // pred_region
      %35 = dma.done [#allocation4], 64
    $region17: #{tpu_custom_call.1} parent=1 // pred_fallthru
      _
    %36 = vsyncpa [#allocation3], 1
    %37 = vsyncpa [#allocation4], 1

</llo_original>
